<compile_context>
chip_gen: v7x
topology: tpu7x:2x2x1
jax: 0.10.0
libtpu: 0.0.40
codegen_flags: <defaults>
</compile_context>

<pallas_src>
import jax
import jax.numpy as jnp
from jax import lax
from jax.experimental import pallas as pl
from jax.experimental.pallas import tpu as pltpu


# ----------------------------- Pallas kernel ------------------------------- #

def pool_conv_relu_kernel(t_ref, w_ref, b_ref, o_ref, xp_ref):
    """Fused MaxPool2x2 -> Conv3x3(pad=1) -> ReLU on a block of `nb` images.

    t_ref : (nb, 4, Hp, Wp*Cin)   four space-to-depth taps of the 2x2 max-pool
    w_ref : (3, Wp*Cin, Wp*Cout)  block-Toeplitz conv weights, one per kernel row
    b_ref : (1, Wp*Cout)          bias tiled across the W positions
    o_ref : (nb*Hp, Wp*Cout)      lane-dense output rows
    xp_ref: (nb, Hp+2, Wp*Cin)    VMEM scratch, H-zero-padded pooled activations
    """
    nb, _, Hp, WCin = t_ref.shape
    WCout = o_ref.shape[-1]
    M = nb * Hp

    # 2x2 / stride-2 max pool == elementwise max of the four taps (VPU).
    taps = t_ref[...]
    pooled = jnp.maximum(jnp.maximum(taps[:, 0], taps[:, 1]),
                         jnp.maximum(taps[:, 2], taps[:, 3]))      # (nb, Hp, Wp*Cin)

    # Zero-pad along H in VMEM (W padding is folded into the Toeplitz weight).
    xp_ref[...] = jnp.zeros_like(xp_ref)
    xp_ref[:, 1:Hp + 1, :] = pooled

    # 3x3 conv as three lane-dense MXU matmuls (K = Wp*Cin), f32 accumulate.
    acc = jnp.zeros((M, WCout), jnp.float32)
    for kh in range(3):
        a = xp_ref[:, kh:kh + Hp, :].reshape(M, WCin)
        acc = acc + jnp.dot(a, w_ref[kh], preferred_element_type=jnp.float32)

    acc = acc + b_ref[...]                      # (1, Wp*Cout) broadcasts over rows
    o_ref[...] = jnp.maximum(acc, 0.0).astype(o_ref.dtype)


# ------------------------------ JAX wrapper -------------------------------- #

def _toeplitz_weight(w, Wp):
    """OIHW (Cout, Cin, 3, 3) -> (3, Wp*Cin, Wp*Cout) block-Toeplitz weights.

    W2[kh][w_in*Cin + ci, w_out*Cout + co] = w[co, ci, kh, w_in - w_out + 1]
    (zero when |w_in - w_out| > 1), i.e. the W direction of the conv -- including
    its zero padding -- is folded into the matmul weight.
    """
    Cout, Cin, KH, KW = w.shape
    mats = []
    for kh in range(KH):
        m = jnp.zeros((Wp, Cin, Wp, Cout), w.dtype)
        for kw in range(KW):
            dw = kw - 1                                   # w_in = w_out + dw
            w_out = jnp.arange(max(0, -dw), Wp - max(0, dw))
            w_in = w_out + dw
            tap = jnp.transpose(w[:, :, kh, kw])          # (Cin, Cout)
            m = m.at[w_in, :, w_out, :].set(tap)
        mats.append(m.reshape(Wp * Cin, Wp * Cout))
    return jnp.stack(mats, 0)


def _pick_batch_block(N, Hp, target_rows=256):
    """Images per grid step: fill ~target_rows MXU rows, divide N evenly."""
    nb = max(1, min(N, target_rows // max(Hp, 1)))
    while N % nb:
        nb -= 1
    return nb


def res_unit_forward(x_nchw, w, b):
    """Res_unit default forward: MaxPool2x2 -> Conv3x3(pad=1) -> ReLU (NCHW)."""
    N, Cin, H, W = x_nchw.shape
    Cout = w.shape[0]
    assert H % 2 == 0 and W % 2 == 0, "MaxPool2d(2,2) path expects even H, W"
    Hp, Wp = H // 2, W // 2
    WCin, WCout = Wp * Cin, Wp * Cout

    # glue: NCHW -> four space-to-depth pooling taps, lane-dense (N, 4, Hp, Wp*Cin).
    x = jnp.transpose(x_nchw, (0, 2, 3, 1))                       # NHWC
    t = x.reshape(N, Hp, 2, Wp, 2, Cin).transpose(0, 2, 4, 1, 3, 5)
    taps = t.reshape(N, 4, Hp, WCin)

    w_toe = _toeplitz_weight(w, Wp)                               # (3, Wp*Cin, Wp*Cout)
    b_row = jnp.tile(b, (Wp,)).reshape(1, WCout)                  # bias per (w, co) lane

    nb = _pick_batch_block(N, Hp)
    grid = (N // nb,)

    out = pl.pallas_call(
        pool_conv_relu_kernel,
        out_shape=jax.ShapeDtypeStruct((N * Hp, WCout), jnp.float32),
        grid=grid,
        in_specs=[
            pl.BlockSpec((nb, 4, Hp, WCin), lambda i: (i, 0, 0, 0)),
            pl.BlockSpec((3, WCin, WCout), lambda i: (0, 0, 0)),
            pl.BlockSpec((1, WCout), lambda i: (0, 0)),
        ],
        out_specs=pl.BlockSpec((nb * Hp, WCout), lambda i: (i, 0)),
        scratch_shapes=[pltpu.VMEM((nb, Hp + 2, WCin), jnp.float32)],
        compiler_params=pltpu.CompilerParams(dimension_semantics=("parallel",)),
    )(taps, w_toe, b_row)

    # glue: (N*Hp, Wp*Cout) -> NCHW
    return out.reshape(N, Hp, Wp, Cout).transpose(0, 3, 1, 2)


# ---------------------------- pure-JAX reference ---------------------------- #

def ref_forward(x_nchw, w, b):
    p = lax.reduce_window(x_nchw, -jnp.inf, lax.max,
                          (1, 1, 2, 2), (1, 1, 2, 2), "VALID")
    dn = lax.conv_dimension_numbers(p.shape, w.shape, ("NCHW", "OIHW", "NCHW"))
    y = lax.conv_general_dilated(p, w, (1, 1), ((1, 1), (1, 1)),
                                 dimension_numbers=dn,
                                 precision=lax.Precision.HIGHEST)
    y = y + b[None, :, None, None]
    return jnp.maximum(y, 0.0)


# ---------------------------------- main ------------------------------------ #

if __name__ == "__main__":
    key = jax.random.PRNGKey(0)
    k_x, k_w, k_b = jax.random.split(key, 3)

    N, Cin, Cout, H, W = 2, 16, 16, 16, 16     # Res_unit defaults: in_ch=out_ch=16
    x = jax.random.normal(k_x, (N, Cin, H, W), jnp.float32)
    w = 0.1 * jax.random.normal(k_w, (Cout, Cin, 3, 3), jnp.float32)
    b = 0.1 * jax.random.normal(k_b, (Cout,), jnp.float32)

    out = jax.block_until_ready(res_unit_forward(x, w, b))
    ref = jax.block_until_ready(ref_forward(x, w, b))

    assert out.shape == (N, Cout, H // 2, W // 2), out.shape
    max_err = float(jnp.max(jnp.abs(out - ref)))
    assert max_err < 1e-3, f"mismatch vs reference: {max_err}"

    print("KERNEL_OK")
</pallas_src>

<mosaic_0001>
module attributes {stable_mosaic.version = 11 : i64} {
  func.func @pool_conv_relu_kernel(%arg0: i32, %arg1: memref<2x4x8x128xf32, #tpu.memory_space<vmem>>, %arg2: memref<3x128x128xf32, #tpu.memory_space<vmem>>, %arg3: memref<1x128xf32, #tpu.memory_space<vmem>>, %arg4: memref<16x128xf32, #tpu.memory_space<vmem>>, %arg5: memref<2x10x128xf32, #tpu.memory_space<vmem>>) attributes {dimension_semantics = [#tpu.dimension_semantics<parallel>], iteration_bounds = array<i64: 1>, scalar_prefetch = 0 : i64, scratch_operands = 1 : i64, tpu.core_type = #tpu.core_type<tc>, window_params = [{transform_indices = @transform_0, window_bounds = array<i64: 2, 4, 8, 128>}, {pipeline_mode = #tpu.pipeline_mode<synchronous>, transform_indices = @transform_1, window_bounds = array<i64: 3, 128, 128>}, {pipeline_mode = #tpu.pipeline_mode<synchronous>, transform_indices = @transform_2, window_bounds = array<i64: 1, 128>}, {transform_indices = @transform_3, window_bounds = array<i64: 16, 128>}]} {
    %c0 = arith.constant 0 : index
    %c0_0 = arith.constant 0 : index
    %c0_1 = arith.constant 0 : index
    %c0_2 = arith.constant 0 : index
    %0 = vector.load %arg1[%c0, %c0_0, %c0_1, %c0_2] : memref<2x4x8x128xf32, #tpu.memory_space<vmem>>, vector<2x4x8x128xf32>
    %1 = vector.extract_strided_slice %0 {offsets = [0, 0, 0, 0], sizes = [2, 1, 8, 128], strides = [1, 1, 1, 1]} : vector<2x4x8x128xf32> to vector<2x1x8x128xf32>
    %2 = vector.shape_cast %1 : vector<2x1x8x128xf32> to vector<2x8x128xf32>
    %3 = vector.extract_strided_slice %0 {offsets = [0, 1, 0, 0], sizes = [2, 1, 8, 128], strides = [1, 1, 1, 1]} : vector<2x4x8x128xf32> to vector<2x1x8x128xf32>
    %4 = vector.shape_cast %3 : vector<2x1x8x128xf32> to vector<2x8x128xf32>
    %5 = arith.maximumf %2, %4 : vector<2x8x128xf32>
    %6 = vector.extract_strided_slice %0 {offsets = [0, 2, 0, 0], sizes = [2, 1, 8, 128], strides = [1, 1, 1, 1]} : vector<2x4x8x128xf32> to vector<2x1x8x128xf32>
    %7 = vector.shape_cast %6 : vector<2x1x8x128xf32> to vector<2x8x128xf32>
    %8 = vector.extract_strided_slice %0 {offsets = [0, 3, 0, 0], sizes = [2, 1, 8, 128], strides = [1, 1, 1, 1]} : vector<2x4x8x128xf32> to vector<2x1x8x128xf32>
    %9 = vector.shape_cast %8 : vector<2x1x8x128xf32> to vector<2x8x128xf32>
    %10 = arith.maximumf %7, %9 : vector<2x8x128xf32>
    %11 = arith.maximumf %5, %10 : vector<2x8x128xf32>
    %cst = arith.constant 0.000000e+00 : f32
    %12 = vector.broadcast %cst : f32 to vector<2x10x128xf32>
    %c0_3 = arith.constant 0 : index
    %c0_4 = arith.constant 0 : index
    %c0_5 = arith.constant 0 : index
    %13 = vector.load %arg5[%c0_3, %c0_4, %c0_5] : memref<2x10x128xf32, #tpu.memory_space<vmem>>, vector<2x10x128xf32>
    tpu.vector_store %arg5[%c0_3, %c0_4, %c0_5], %12 {strides = array<i32>} : memref<2x10x128xf32, #tpu.memory_space<vmem>>, vector<2x10x128xf32>,
    %c0_6 = arith.constant 0 : index
    %c1 = arith.constant 1 : index
    %c0_7 = arith.constant 0 : index
    %14 = vector.load %arg5[%c0_6, %c1, %c0_7] : memref<2x10x128xf32, #tpu.memory_space<vmem>>, vector<2x8x128xf32>
    tpu.vector_store %arg5[%c0_6, %c1, %c0_7], %11 {strides = array<i32>} : memref<2x10x128xf32, #tpu.memory_space<vmem>>, vector<2x8x128xf32>,
    %cst_8 = arith.constant 0.000000e+00 : f32
    %15 = vector.broadcast %cst_8 : f32 to vector<16x128xf32>
    %c0_9 = arith.constant 0 : index
    %c0_10 = arith.constant 0 : index
    %c0_11 = arith.constant 0 : index
    %16 = vector.load %arg5[%c0_9, %c0_10, %c0_11] : memref<2x10x128xf32, #tpu.memory_space<vmem>>, vector<2x8x128xf32>
    %17 = vector.shape_cast %16 : vector<2x8x128xf32> to vector<16x128xf32>
    %c0_12 = arith.constant 0 : index
    %c0_13 = arith.constant 0 : index
    %c0_14 = arith.constant 0 : index
    %18 = vector.load %arg2[%c0_12, %c0_13, %c0_14] : memref<3x128x128xf32, #tpu.memory_space<vmem>>, vector<1x128x128xf32>
    %19 = vector.shape_cast %18 : vector<1x128x128xf32> to vector<128x128xf32>
    %cst_15 = arith.constant dense<0.000000e+00> : vector<16x128xf32>
    %20 = tpu.matmul %17, %19, %cst_15 {dimension_numbers = #tpu.dot_dimension_numbers<[1], [0], [0], [1], [0, 0, 1, 1], [], []>} : vector<16x128xf32>, vector<128x128xf32>, vector<16x128xf32> -> vector<16x128xf32>
    %21 = arith.addf %15, %20 : vector<16x128xf32>
    %c0_16 = arith.constant 0 : index
    %c1_17 = arith.constant 1 : index
    %c0_18 = arith.constant 0 : index
    %22 = vector.load %arg5[%c0_16, %c1_17, %c0_18] : memref<2x10x128xf32, #tpu.memory_space<vmem>>, vector<2x8x128xf32>
    %23 = vector.shape_cast %22 : vector<2x8x128xf32> to vector<16x128xf32>
    %c1_19 = arith.constant 1 : index
    %c0_20 = arith.constant 0 : index
    %c0_21 = arith.constant 0 : index
    %24 = vector.load %arg2[%c1_19, %c0_20, %c0_21] : memref<3x128x128xf32, #tpu.memory_space<vmem>>, vector<1x128x128xf32>
    %25 = vector.shape_cast %24 : vector<1x128x128xf32> to vector<128x128xf32>
    %cst_22 = arith.constant dense<0.000000e+00> : vector<16x128xf32>
    %26 = tpu.matmul %23, %25, %cst_22 {dimension_numbers = #tpu.dot_dimension_numbers<[1], [0], [0], [1], [0, 0, 1, 1], [], []>} : vector<16x128xf32>, vector<128x128xf32>, vector<16x128xf32> -> vector<16x128xf32>
    %27 = arith.addf %21, %26 : vector<16x128xf32>
    %c0_23 = arith.constant 0 : index
    %c2 = arith.constant 2 : index
    %c0_24 = arith.constant 0 : index
    %28 = vector.load %arg5[%c0_23, %c2, %c0_24] : memref<2x10x128xf32, #tpu.memory_space<vmem>>, vector<2x8x128xf32>
    %29 = vector.shape_cast %28 : vector<2x8x128xf32> to vector<16x128xf32>
    %c2_25 = arith.constant 2 : index
    %c0_26 = arith.constant 0 : index
    %c0_27 = arith.constant 0 : index
    %30 = vector.load %arg2[%c2_25, %c0_26, %c0_27] : memref<3x128x128xf32, #tpu.memory_space<vmem>>, vector<1x128x128xf32>
    %31 = vector.shape_cast %30 : vector<1x128x128xf32> to vector<128x128xf32>
    %cst_28 = arith.constant dense<0.000000e+00> : vector<16x128xf32>
    %32 = tpu.matmul %29, %31, %cst_28 {dimension_numbers = #tpu.dot_dimension_numbers<[1], [0], [0], [1], [0, 0, 1, 1], [], []>} : vector<16x128xf32>, vector<128x128xf32>, vector<16x128xf32> -> vector<16x128xf32>
    %33 = arith.addf %27, %32 : vector<16x128xf32>
    %c0_29 = arith.constant 0 : index
    %c0_30 = arith.constant 0 : index
    %34 = vector.load %arg3[%c0_29, %c0_30] : memref<1x128xf32, #tpu.memory_space<vmem>>, vector<1x128xf32>
    %35 = vector.broadcast %34 : vector<1x128xf32> to vector<16x128xf32>
    %36 = arith.addf %33, %35 : vector<16x128xf32>
    %cst_31 = arith.constant 0.000000e+00 : f32
    %37 = vector.broadcast %cst_31 : f32 to vector<16x128xf32>
    %38 = arith.maximumf %36, %37 : vector<16x128xf32>
    %c0_32 = arith.constant 0 : index
    %c0_33 = arith.constant 0 : index
    %39 = vector.load %arg4[%c0_32, %c0_33] : memref<16x128xf32, #tpu.memory_space<vmem>>, vector<16x128xf32>
    tpu.vector_store %arg4[%c0_32, %c0_33], %38 {strides = array<i32>} : memref<16x128xf32, #tpu.memory_space<vmem>>, vector<16x128xf32>,
    return
  }
  func.func @transform_0(%arg0: i32) -> (i32, i32, i32, i32) {
    %c0_i32 = arith.constant 0 : i32
    %c0_i32_0 = arith.constant 0 : i32
    %c0_i32_1 = arith.constant 0 : i32
    %c0_i32_2 = arith.constant 0 : i32
    return %arg0, %c0_i32, %c0_i32_0, %c0_i32_1 : i32, i32, i32, i32
  }
  func.func @transform_1(%arg0: i32) -> (i32, i32, i32) {
    %c0_i32 = arith.constant 0 : i32
    %c0_i32_0 = arith.constant 0 : i32
    %c0_i32_1 = arith.constant 0 : i32
    %c0_i32_2 = arith.constant 0 : i32
    return %c0_i32, %c0_i32_0, %c0_i32_1 : i32, i32, i32
  }
  func.func @transform_2(%arg0: i32) -> (i32, i32) {
    %c0_i32 = arith.constant 0 : i32
    %c0_i32_0 = arith.constant 0 : i32
    %c0_i32_1 = arith.constant 0 : i32
    return %c0_i32, %c0_i32_0 : i32, i32
  }
  func.func @transform_3(%arg0: i32) -> (i32, i32) {
    %c0_i32 = arith.constant 0 : i32
    %c0_i32_0 = arith.constant 0 : i32
    return %arg0, %c0_i32 : i32, i32
  }
}

</mosaic_0001>

<llo_original>
// kernel: tpu_custom_call.1
$region0: #{tpu_custom_call.1}
  #allocation0 [shape = 'u32[]', space=smem, size = 0x4, offset = 0x4, fixed_abs, tag = 'smem constant byte address 0x4 - core index']
  #allocation1 [shape = 'u32[144,128]{1,0:T(1,128)}', space=vmem, size = 0x12000, scoped, tag = 'internal scratch']
  #allocation2 [shape = 'f32[2,10,128]{2,1,0:T(8,128)}', space=vmem, size = 0x4000, scoped, tag = 'scratch operand']
  %s0 = inlined_call_operand.hbm [shape: f32[2,4,8,128], index: 0, kind: input, shape index: {}]
  %s1 = inlined_call_operand.hbm [shape: f32[3,128,128], index: 1, kind: input, shape index: {}]
  %s2 = inlined_call_operand.vmem [shape: f32[1,128], index: 2, kind: input, shape index: {}]
  %s3 = inlined_call_operand.hbm [shape: f32[16,128], index: 3, kind: output, shape index: {}]
  %s4 = sld [smem:[#allocation0]]
  $region30: #{tpu_custom_call.1} parent=0
    _
  %s6 = ssub.s32 1, %s4
  %s7 = scalar_select 0, %s6, %s4
  $region1: #{tpu_custom_call.1} parent=0
    #allocation3 [shape = 'u8[32768]{0}', space=vmem, size = 0x8000, scoped, tag = 'input window, operand 0, single buffered']
    #allocation4 [shape = 's32[1]{0}', space=sflag, size = 0x4, scoped, tag = 'scoped memory for tpu_custom_call.1']
    #allocation5 [shape = 's32[1]{0}', space=sflag, size = 0x4, scoped, tag = 'scoped memory for tpu_custom_call.1']
    #allocation6 [shape = 'u8[196608]{0}', space=vmem, size = 0x30000, scoped, tag = 'input window, operand 1, single buffered']
    #allocation7 [shape = 's32[1]{0}', space=sflag, size = 0x4, scoped, tag = 'scoped memory for tpu_custom_call.1']
    #allocation8 [shape = 'u8[8192]{0}', space=vmem, size = 0x2000, scoped, tag = 'output window, operand 0, single buffered']
    %8 = vsyncpa [#allocation4], 0
    %9 = vsyncpa [#allocation7], 0
    %10 = vsyncpa [#allocation5], 0
    // Predicated region
    $region2: #{tpu_custom_call.1} parent=1 // pred_check
      _
    $region3: #{tpu_custom_call.1} parent=1 // pred_check_branch
      %12 = sbr.rel (0) target = $region5
    $region4: #{tpu_custom_call.1} parent=1 // pred_region
      %s14 = ssub.s32 1024, 1024
      %15 = vsyncadd [#allocation4], %s14
      %s16 = sshll.u32 [#allocation3], 4
      %s17 = int_to_ptr.vmem [resolvable:$true] %s16
      %22 = dma.hbm_to_vmem [thread:$0]  %s0, 1024, %s17, [#allocation4], 128, 128, 8
    $region5: #{tpu_custom_call.1} parent=1 // pred_fallthru
      _
    // Predicated region
    $region6: #{tpu_custom_call.1} parent=1 // pred_check
      _
    $region7: #{tpu_custom_call.1} parent=1 // pred_check_branch
      %24 = sbr.rel (0) target = $region9
    $region8: #{tpu_custom_call.1} parent=1 // pred_region
      %s26 = ssub.s32 6144, 6144
      %27 = vsyncadd [#allocation7], %s26
      %s28 = sshll.u32 [#allocation6], 4
      %s29 = int_to_ptr.vmem [resolvable:$true] %s28
      %34 = dma.hbm_to_vmem [thread:$0]  %s1, 6144, %s29, [#allocation7], 128, 128, 8
    $region9: #{tpu_custom_call.1} parent=1 // pred_fallthru
      _
    // Predicated region
    $region10: #{tpu_custom_call.1} parent=1 // pred_check
      _
    $region11: #{tpu_custom_call.1} parent=1 // pred_check_branch
      %36 = sbr.rel (0) target = $region13
    $region12: #{tpu_custom_call.1} parent=1 // pred_region
      _
    $region13: #{tpu_custom_call.1} parent=1 // pred_fallthru
      _
    // Predicated region
    $region14: #{tpu_custom_call.1} parent=1 // pred_check
      _
    $region15: #{tpu_custom_call.1} parent=1 // pred_check_branch
      %38 = sbr.rel (0) target = $region17
    $region16: #{tpu_custom_call.1} parent=1 // pred_region
      %39 = dma.done [#allocation4], 1024
    $region17: #{tpu_custom_call.1} parent=1 // pred_fallthru
      _
    // Predicated region
    $region18: #{tpu_custom_call.1} parent=1 // pred_check
      _
    $region19: #{tpu_custom_call.1} parent=1 // pred_check_branch
      %41 = sbr.rel (0) target = $region21
    $region20: #{tpu_custom_call.1} parent=1 // pred_region
      %42 = dma.done [#allocation7], 6144
    $region21: #{tpu_custom_call.1} parent=1 // pred_fallthru
      _
    %v43 = vld [vmem:[#allocation3] sm:$0xff]
    %v44 = vld [vmem:[#allocation3 + $0x8] sm:$0xff]
    %v45 = vld [vmem:[#allocation3 + $0x10] sm:$0xff]
    %v46 = vld [vmem:[#allocation3 + $0x18] sm:$0xff]
    %v47 = vld [vmem:[#allocation3 + $0x20] sm:$0xff]
    %v48 = vld [vmem:[#allocation3 + $0x28] sm:$0xff]
    %v49 = vld [vmem:[#allocation3 + $0x30] sm:$0xff]
    %v50 = vld [vmem:[#allocation3 + $0x38] sm:$0xff]
    %v51 = vmax.f32 %v43, %v44
    %v52 = vmax.f32 %v47, %v48
    %v53 = vmax.f32 %v45, %v46
    %v54 = vmax.f32 %v49, %v50
    %v55 = vmax.f32 %v51, %v53
    %v56 = vmax.f32 %v52, %v54
    %57 = vst [vmem:[#allocation2] sm:$0xff] 0.0
    %58 = vst [vmem:[#allocation2 + $0x8] sm:$0x3] 0.0
    %59 = vst [vmem:[#allocation2 + $0x10] sm:$0xff] 0.0
    %60 = vst [vmem:[#allocation2 + $0x18] sm:$0x3] 0.0
    %61 = vst [vmem:[#allocation2 + $0x1] sm:$0xff] %v55
    %62 = vst [vmem:[#allocation2 + $0x11] sm:$0xff] %v56
    %v63 = vld [vmem:[#allocation2] sm:$0xff]
    %v64 = vld [vmem:[#allocation2 + $0x10] sm:$0xff]
    %v65 = vld [vmem:[#allocation6] sm:$0xff]
    %v66 = vld [vmem:[#allocation6 + $0x8] sm:$0xff]
    %v67 = vld [vmem:[#allocation6 + $0x10] sm:$0xff]
    %v68 = vld [vmem:[#allocation6 + $0x18] sm:$0xff]
    %v69 = vld [vmem:[#allocation6 + $0x20] sm:$0xff]
    %v70 = vld [vmem:[#allocation6 + $0x28] sm:$0xff]
    %v71 = vld [vmem:[#allocation6 + $0x30] sm:$0xff]
    %v72 = vld [vmem:[#allocation6 + $0x38] sm:$0xff]
    %v73 = vld [vmem:[#allocation6 + $0x40] sm:$0xff]
    %v74 = vld [vmem:[#allocation6 + $0x48] sm:$0xff]
    %v75 = vld [vmem:[#allocation6 + $0x50] sm:$0xff]
    %v76 = vld [vmem:[#allocation6 + $0x58] sm:$0xff]
    %v77 = vld [vmem:[#allocation6 + $0x60] sm:$0xff]
    %v78 = vld [vmem:[#allocation6 + $0x68] sm:$0xff]
    %v79 = vld [vmem:[#allocation6 + $0x70] sm:$0xff]
    %v80 = vld [vmem:[#allocation6 + $0x78] sm:$0xff]
    %v81 = vld [vmem:[#allocation2 + $0x1] sm:$0xff]
    %v82 = vld [vmem:[#allocation2 + $0x11] sm:$0xff]
    %s83 = scalar_lea.vmem [#allocation6], 128
    %v84 = vld [vmem:[%s83] sm:$0xff]
    %v85 = vld [vmem:[%s83 + $0x8] sm:$0xff]
    %v86 = vld [vmem:[%s83 + $0x10] sm:$0xff]
    %v87 = vld [vmem:[%s83 + $0x18] sm:$0xff]
    %v88 = vld [vmem:[%s83 + $0x20] sm:$0xff]
    %v89 = vld [vmem:[%s83 + $0x28] sm:$0xff]
    %v90 = vld [vmem:[%s83 + $0x30] sm:$0xff]
    %v91 = vld [vmem:[%s83 + $0x38] sm:$0xff]
    %v92 = vld [vmem:[%s83 + $0x40] sm:$0xff]
    %v93 = vld [vmem:[%s83 + $0x48] sm:$0xff]
    %v94 = vld [vmem:[%s83 + $0x50] sm:$0xff]
    %v95 = vld [vmem:[%s83 + $0x58] sm:$0xff]
    %v96 = vld [vmem:[%s83 + $0x60] sm:$0xff]
    %v97 = vld [vmem:[%s83 + $0x68] sm:$0xff]
    %v98 = vld [vmem:[%s83 + $0x70] sm:$0xff]
    %v99 = vld [vmem:[%s83 + $0x78] sm:$0xff]
    %100 = vmatprep.subr.mxu0 0.0
    %101 = vmatpush1.msra.mxu0 %v84
    %102 = vmatprep.subr.mxu0 0.0
    %103 = vmatpush1.msra.mxu0 %v85
    %104 = vmatprep.subr.mxu0 0.0
    %105 = vmatpush1.msra.mxu0 %v86
    %106 = vmatprep.subr.mxu0 0.0
    %107 = vmatpush1.msra.mxu0 %v87
    %108 = vmatprep.subr.mxu0 0.0
    %109 = vmatpush1.msra.mxu0 %v88
    %110 = vmatprep.subr.mxu0 0.0
    %111 = vmatpush1.msra.mxu0 %v89
    %112 = vmatprep.subr.mxu0 0.0
    %113 = vmatpush1.msra.mxu0 %v90
    %114 = vmatprep.subr.mxu0 0.0
    %115 = vmatpush1.msra.mxu0 %v91
    %116 = vmatprep.subr.mxu0 0.0
    %117 = vmatpush1.msra.mxu0 %v92
    %118 = vmatprep.subr.mxu0 0.0
    %119 = vmatpush1.msra.mxu0 %v93
    %120 = vmatprep.subr.mxu0 0.0
    %121 = vmatpush1.msra.mxu0 %v94
    %122 = vmatprep.subr.mxu0 0.0
    %123 = vmatpush1.msra.mxu0 %v95
    %124 = vmatprep.subr.mxu0 0.0
    %125 = vmatpush1.msra.mxu0 %v96
    %126 = vmatprep.subr.mxu0 0.0
    %127 = vmatpush1.msra.mxu0 %v97
    %128 = vmatprep.subr.mxu0 0.0
    %129 = vmatpush1.msra.mxu0 %v98
    %130 = vmatprep.subr.mxu0 0.0
    %131 = vmatpush1.msra.mxu0 %v99
    %132 = vmatprep.subr.mxu0 0.0
    %133 = vmatpush1.msra.mxu0 0.0
    %134 = vmatprep.subr.mxu0 0.0
    %135 = vmatpush1.msra.mxu0 0.0
    %136 = vmatprep.subr.mxu0 0.0
    %137 = vmatpush1.msra.mxu0 0.0
    %138 = vmatprep.subr.mxu0 0.0
    %139 = vmatpush1.msra.mxu0 0.0
    %140 = vmatprep.subr.mxu0 0.0
    %141 = vmatpush1.msra.mxu0 0.0
    %142 = vmatprep.subr.mxu0 0.0
    %143 = vmatpush1.msra.mxu0 0.0
    %144 = vmatprep.subr.mxu0 0.0
    %145 = vmatpush1.msra.mxu0 0.0
    %146 = vmatprep.subr.mxu0 0.0
    %147 = vmatpush1.msra.mxu0 0.0
    %148 = vmatprep.subr.mxu0 0.0
    %149 = vmatpush1.msra.mxu0 0.0
    %150 = vmatprep.subr.mxu0 0.0
    %151 = vmatpush1.msra.mxu0 0.0
    %152 = vmatprep.subr.mxu0 0.0
    %153 = vmatpush1.msra.mxu0 0.0
    %154 = vmatprep.subr.mxu0 0.0
    %155 = vmatpush1.msra.mxu0 0.0
    %156 = vmatprep.subr.mxu0 0.0
    %157 = vmatpush1.msra.mxu0 0.0
    %158 = vmatprep.subr.mxu0 0.0
    %159 = vmatpush1.msra.mxu0 0.0
    %160 = vmatprep.subr.mxu0 0.0
    %161 = vmatpush1.msra.mxu0 0.0
    %162 = vmatprep.subr.mxu0 0.0
    %163 = vmatpush1.msra.mxu0 0.0
    %164 = vmatprep.mubr.f32.mxu0 0.0
    %165 = vmatmul.mubr.f32.gmra.mrb[0].mxu0 %v81
    %v166 = vpop.f32.mrb[0].mxu0
    %v167 = vadd.f32 0.0, %v166
    %v168 = vpop.f32.mrb[0].mxu0
    %169 = vmatprep.mubr.f32.mxu0 0.0
    %170 = vmatmul.mubr.f32.gmra.mrb[0].mxu0 %v82
    %v171 = vpop.f32.mrb[0].mxu0
    %v172 = vadd.f32 0.0, %v171
    %v173 = vpop.f32.mrb[0].mxu0
    %174 = vdwg.mxu0
    %175 = vmatprep.subr.mxu0 0.0
    %176 = vmatpush1.msra.mxu0 %v65
    %177 = vmatprep.subr.mxu0 0.0
    %178 = vmatpush1.msra.mxu0 %v66
    %179 = vmatprep.subr.mxu0 0.0
    %180 = vmatpush1.msra.mxu0 %v67
    %181 = vmatprep.subr.mxu0 0.0
    %182 = vmatpush1.msra.mxu0 %v68
    %183 = vmatprep.subr.mxu0 0.0
    %184 = vmatpush1.msra.mxu0 %v69
    %185 = vmatprep.subr.mxu0 0.0
    %186 = vmatpush1.msra.mxu0 %v70
    %187 = vmatprep.subr.mxu0 0.0
    %188 = vmatpush1.msra.mxu0 %v71
    %189 = vmatprep.subr.mxu0 0.0
    %190 = vmatpush1.msra.mxu0 %v72
    %191 = vmatprep.subr.mxu0 0.0
    %192 = vmatpush1.msra.mxu0 %v73
    %193 = vmatprep.subr.mxu0 0.0
    %194 = vmatpush1.msra.mxu0 %v74
    %195 = vmatprep.subr.mxu0 0.0
    %196 = vmatpush1.msra.mxu0 %v75
    %197 = vmatprep.subr.mxu0 0.0
    %198 = vmatpush1.msra.mxu0 %v76
    %199 = vmatprep.subr.mxu0 0.0
    %200 = vmatpush1.msra.mxu0 %v77
    %201 = vmatprep.subr.mxu0 0.0
    %202 = vmatpush1.msra.mxu0 %v78
    %203 = vmatprep.subr.mxu0 0.0
    %204 = vmatpush1.msra.mxu0 %v79
    %205 = vmatprep.subr.mxu0 0.0
    %206 = vmatpush1.msra.mxu0 %v80
    %207 = vmatprep.subr.mxu0 0.0
    %208 = vmatpush1.msra.mxu0 0.0
    %209 = vmatprep.subr.mxu0 0.0
    %210 = vmatpush1.msra.mxu0 0.0
    %211 = vmatprep.subr.mxu0 0.0
    %212 = vmatpush1.msra.mxu0 0.0
    %213 = vmatprep.subr.mxu0 0.0
    %214 = vmatpush1.msra.mxu0 0.0
    %215 = vmatprep.subr.mxu0 0.0
    %216 = vmatpush1.msra.mxu0 0.0
    %217 = vmatprep.subr.mxu0 0.0
    %218 = vmatpush1.msra.mxu0 0.0
    %219 = vmatprep.subr.mxu0 0.0
    %220 = vmatpush1.msra.mxu0 0.0
    %221 = vmatprep.subr.mxu0 0.0
    %222 = vmatpush1.msra.mxu0 0.0
    %223 = vmatprep.subr.mxu0 0.0
    %224 = vmatpush1.msra.mxu0 0.0
    %225 = vmatprep.subr.mxu0 0.0
    %226 = vmatpush1.msra.mxu0 0.0
    %227 = vmatprep.subr.mxu0 0.0
    %228 = vmatpush1.msra.mxu0 0.0
    %229 = vmatprep.subr.mxu0 0.0
    %230 = vmatpush1.msra.mxu0 0.0
    %231 = vmatprep.subr.mxu0 0.0
    %232 = vmatpush1.msra.mxu0 0.0
    %233 = vmatprep.subr.mxu0 0.0
    %234 = vmatpush1.msra.mxu0 0.0
    %235 = vmatprep.subr.mxu0 0.0
    %236 = vmatpush1.msra.mxu0 0.0
    %237 = vmatprep.subr.mxu0 0.0
    %238 = vmatpush1.msra.mxu0 0.0
    %239 = vmatprep.mubr.f32.mxu0 0.0
    %240 = vmatmul.mubr.f32.gmra.mrb[0].mxu0 %v63
    %v241 = vpop.f32.mrb[0].mxu0
    %v242 = vadd.f32 %v167, %v241
    %v243 = vpop.f32.mrb[0].mxu0
    %244 = vmatprep.mubr.f32.mxu0 0.0
    %245 = vmatmul.mubr.f32.gmra.mrb[0].mxu0 %v64
    %v246 = vpop.f32.mrb[0].mxu0
    %v247 = vadd.f32 %v172, %v246
    %v248 = vpop.f32.mrb[0].mxu0
    %249 = vdwg.mxu0
    %v250 = vld [vmem:[#allocation2 + $0x2] sm:$0xff]
    %v251 = vld [vmem:[#allocation2 + $0x12] sm:$0xff]
    %s252 = scalar_lea.vmem [#allocation6], 256
    %v253 = vld [vmem:[%s252] sm:$0xff]
    %v254 = vld [vmem:[%s252 + $0x8] sm:$0xff]
    %v255 = vld [vmem:[%s252 + $0x10] sm:$0xff]
    %v256 = vld [vmem:[%s252 + $0x18] sm:$0xff]
    %v257 = vld [vmem:[%s252 + $0x20] sm:$0xff]
    %v258 = vld [vmem:[%s252 + $0x28] sm:$0xff]
    %v259 = vld [vmem:[%s252 + $0x30] sm:$0xff]
    %v260 = vld [vmem:[%s252 + $0x38] sm:$0xff]
    %v261 = vld [vmem:[%s252 + $0x40] sm:$0xff]
    %v262 = vld [vmem:[%s252 + $0x48] sm:$0xff]
    %v263 = vld [vmem:[%s252 + $0x50] sm:$0xff]
    %v264 = vld [vmem:[%s252 + $0x58] sm:$0xff]
    %v265 = vld [vmem:[%s252 + $0x60] sm:$0xff]
    %v266 = vld [vmem:[%s252 + $0x68] sm:$0xff]
    %v267 = vld [vmem:[%s252 + $0x70] sm:$0xff]
    %v268 = vld [vmem:[%s252 + $0x78] sm:$0xff]
    %269 = vmatprep.subr.mxu0 0.0
    %270 = vmatpush1.msra.mxu0 %v253
    %271 = vmatprep.subr.mxu0 0.0
    %272 = vmatpush1.msra.mxu0 %v254
    %273 = vmatprep.subr.mxu0 0.0
    %274 = vmatpush1.msra.mxu0 %v255
    %275 = vmatprep.subr.mxu0 0.0
    %276 = vmatpush1.msra.mxu0 %v256
    %277 = vmatprep.subr.mxu0 0.0
    %278 = vmatpush1.msra.mxu0 %v257
    %279 = vmatprep.subr.mxu0 0.0
    %280 = vmatpush1.msra.mxu0 %v258
    %281 = vmatprep.subr.mxu0 0.0
    %282 = vmatpush1.msra.mxu0 %v259
    %283 = vmatprep.subr.mxu0 0.0
    %284 = vmatpush1.msra.mxu0 %v260
    %285 = vmatprep.subr.mxu0 0.0
    %286 = vmatpush1.msra.mxu0 %v261
    %287 = vmatprep.subr.mxu0 0.0
    %288 = vmatpush1.msra.mxu0 %v262
    %289 = vmatprep.subr.mxu0 0.0
    %290 = vmatpush1.msra.mxu0 %v263
    %291 = vmatprep.subr.mxu0 0.0
    %292 = vmatpush1.msra.mxu0 %v264
    %293 = vmatprep.subr.mxu0 0.0
    %294 = vmatpush1.msra.mxu0 %v265
    %295 = vmatprep.subr.mxu0 0.0
    %296 = vmatpush1.msra.mxu0 %v266
    %297 = vmatprep.subr.mxu0 0.0
    %298 = vmatpush1.msra.mxu0 %v267
    %299 = vmatprep.subr.mxu0 0.0
    %300 = vmatpush1.msra.mxu0 %v268
    %301 = vmatprep.subr.mxu0 0.0
    %302 = vmatpush1.msra.mxu0 0.0
    %303 = vmatprep.subr.mxu0 0.0
    %304 = vmatpush1.msra.mxu0 0.0
    %305 = vmatprep.subr.mxu0 0.0
    %306 = vmatpush1.msra.mxu0 0.0
    %307 = vmatprep.subr.mxu0 0.0
    %308 = vmatpush1.msra.mxu0 0.0
    %309 = vmatprep.subr.mxu0 0.0
    %310 = vmatpush1.msra.mxu0 0.0
    %311 = vmatprep.subr.mxu0 0.0
    %312 = vmatpush1.msra.mxu0 0.0
    %313 = vmatprep.subr.mxu0 0.0
    %314 = vmatpush1.msra.mxu0 0.0
    %315 = vmatprep.subr.mxu0 0.0
    %316 = vmatpush1.msra.mxu0 0.0
    %317 = vmatprep.subr.mxu0 0.0
    %318 = vmatpush1.msra.mxu0 0.0
    %319 = vmatprep.subr.mxu0 0.0
    %320 = vmatpush1.msra.mxu0 0.0
    %321 = vmatprep.subr.mxu0 0.0
    %322 = vmatpush1.msra.mxu0 0.0
    %323 = vmatprep.subr.mxu0 0.0
    %324 = vmatpush1.msra.mxu0 0.0
    %325 = vmatprep.subr.mxu0 0.0
    %326 = vmatpush1.msra.mxu0 0.0
    %327 = vmatprep.subr.mxu0 0.0
    %328 = vmatpush1.msra.mxu0 0.0
    %329 = vmatprep.subr.mxu0 0.0
    %330 = vmatpush1.msra.mxu0 0.0
    %331 = vmatprep.subr.mxu0 0.0
    %332 = vmatpush1.msra.mxu0 0.0
    %333 = vmatprep.mubr.f32.mxu0 0.0
    %334 = vmatmul.mubr.f32.gmra.mrb[0].mxu0 %v250
    %v335 = vpop.f32.mrb[0].mxu0
    %v336 = vadd.f32 0.0, %v335
    %v337 = vpop.f32.mrb[0].mxu0
    %338 = vmatprep.mubr.f32.mxu0 0.0
    %339 = vmatmul.mubr.f32.gmra.mrb[0].mxu0 %v251
    %v340 = vpop.f32.mrb[0].mxu0
    %v341 = vadd.f32 0.0, %v340
    %v342 = vpop.f32.mrb[0].mxu0
    %343 = vdwg.mxu0
    %v344 = vadd.f32 %v242, %v336
    %v345 = vadd.f32 %v247, %v341
    %v346 = vld [vmem:[%s2] sm:$0x1]
    %v348 = vlaneseq
    %v349 = vshrl.u32 %v348, 7
    %v350 = vsub.s32 0, %v349
    %v351 = vrot.slane %v346, %v350
    %v353 = vadd.f32 %v344, %v351
    %v354 = vadd.f32 %v345, %v351
    %v355 = vmax.f32 %v353, 0.0
    %v356 = vmax.f32 %v354, 0.0
    %357 = vst [vmem:[#allocation8] sm:$0xff] %v355
    %358 = vst [vmem:[#allocation8 + $0x8] sm:$0xff] %v356
    // Predicated region
    $region22: #{tpu_custom_call.1} parent=1 // pred_check
      _
    $region23: #{tpu_custom_call.1} parent=1 // pred_check_branch
      %360 = sbr.rel (0) target = $region25
    $region24: #{tpu_custom_call.1} parent=1 // pred_region
      %s362 = ssub.s32 256, 256
      %363 = vsyncadd [#allocation5], %s362
      %s364 = sshll.u32 [#allocation8], 4
      %s365 = int_to_ptr.vmem [resolvable:$true] %s364
      %370 = dma.vmem_to_hbm [thread:$0]  %s365, 256, %s3, [#allocation5], 128, 128, 8
    $region25: #{tpu_custom_call.1} parent=1 // pred_fallthru
      _
    // Predicated region
    $region26: #{tpu_custom_call.1} parent=1 // pred_check
      _
    $region27: #{tpu_custom_call.1} parent=1 // pred_check_branch
      %372 = sbr.rel (0) target = $region29
    $region28: #{tpu_custom_call.1} parent=1 // pred_region
      %373 = dma.done [#allocation5], 256
    $region29: #{tpu_custom_call.1} parent=1 // pred_fallthru
      _
    %374 = vsyncpa [#allocation4], 1
    %375 = vsyncpa [#allocation7], 1
    %376 = vsyncpa [#allocation5], 1

</llo_original>
